<compile_context>
chip_gen: v6e
topology: v6e:2x2x1
jax: 0.10.0
libtpu: 0.0.40
codegen_flags: <defaults>
</compile_context>

<pallas_src>
import jax
import jax.numpy as jnp
from jax.experimental import pallas as pl
from jax.experimental.pallas import tpu as pltpu


def _round_up(x: int, m: int) -> int:
    return ((x + m - 1) // m) * m


def _fused_linear_relu_kernel(x_ref, w_ref, b_ref, out_ref):
    # x_ref:   [Btile, F]    activation tile (streams over the grid)
    # w_ref:   [F, P+V]      resident fused weight
    # b_ref:   [1, P+V]      resident fused bias
    # out_ref: [Btile, P+V]  lane-dense output tile (single unmasked-wide store)
    y = jnp.dot(x_ref[...], w_ref[...], preferred_element_type=jnp.float32)
    y = y + b_ref[...].astype(jnp.float32)
    out_ref[...] = jnp.maximum(y, 0.0).astype(out_ref.dtype)


def fuse_params(w_pi, b_pi, w_vf, b_vf):
    """Concatenate policy/value params once (outside the hot path).

    w_pi: [F, P], b_pi: [P], w_vf: [F, V], b_vf: [V]
    -> (w_cat [F, P+V], b_cat [1, P+V])
    """
    w_cat = jnp.concatenate([w_pi, w_vf], axis=1)
    b_cat = jnp.concatenate([b_pi, b_vf], axis=0).reshape(1, -1)
    return w_cat, b_cat


def _vmem_step_bytes(bt, f, o, in_dt, w_dt, out_dt):
    """Rough double-buffered VMEM footprint of one grid step (lane-padded)."""
    fp, op = _round_up(f, 128), _round_up(o, 128)
    x_b = bt * fp * jnp.dtype(in_dt).itemsize
    o_b = bt * op * jnp.dtype(out_dt).itemsize
    w_b = _round_up(f, 8) * op * jnp.dtype(w_dt).itemsize
    b_b = 8 * op * 4
    return 2 * (x_b + o_b) + w_b + b_b


def custom_network_forward_fused(features, w_cat, b_cat, *, block_b=2048):
    """features: [B, F]; w_cat: [F, O]; b_cat: [1, O].  Returns fused [B, O].

    Preferred entry point: the policy half is out[:, :P], value half is
    out[:, P:], but slicing (or better, consuming the halves in the next op)
    should happen where the data is already being touched.
    """
    B, F = features.shape
    O = w_cat.shape[1]
    assert b_cat.shape == (1, O)

    # Sublane-aligned batch tile.  Cap at ~ceil(B/2) so B > 8 always yields at
    # least 2 grid tiles (v7x: both TensorCores get work), and halve until the
    # double-buffered tiles fit a conservative ~24 MiB VMEM budget.
    bt = _round_up(min(block_b, B), 8)
    if B > 8:
        bt = min(bt, _round_up(pl.cdiv(B, 2), 8))
    bt = max(bt, 8)
    while bt > 8 and _vmem_step_bytes(bt, F, O, features.dtype, w_cat.dtype,
                                      features.dtype) > (24 << 20):
        bt = max(8, _round_up(bt // 2, 8))

    nb = pl.cdiv(B, bt)  # ragged final tile handled by Pallas write-masking

    return pl.pallas_call(
        _fused_linear_relu_kernel,
        out_shape=jax.ShapeDtypeStruct((B, O), features.dtype),
        grid=(nb,),
        in_specs=[
            pl.BlockSpec((bt, F), lambda i: (i, 0)),   # activation tile streams
            pl.BlockSpec((F, O), lambda i: (0, 0)),    # weight resident
            pl.BlockSpec((1, O), lambda i: (0, 0)),    # bias resident
        ],
        out_specs=pl.BlockSpec((bt, O), lambda i: (i, 0)),
        compiler_params=pltpu.CompilerParams(
            dimension_semantics=("parallel",),         # v7x: split tiles over 2 TCs
            vmem_limit_bytes=32 << 20,                 # safe on v5e/v6e/v7x
        ),
    )(features, w_cat, b_cat)


def custom_network_forward(features, w_cat, b_cat, dim_pi, dim_vf, *, block_b=2048):
    """Module-compatible forward: returns (latent_pi [B, P], latent_vf [B, V]).

    Note: the two lane-axis slices below are extra XLA copies; prefer
    custom_network_forward_fused and consume the halves downstream.
    """
    out = custom_network_forward_fused(features, w_cat, b_cat, block_b=block_b)
    return out[:, :dim_pi], out[:, dim_pi:dim_pi + dim_vf]


def init_params(key, feature_dim, last_layer_dim_pi=64, last_layer_dim_vf=64,
                dtype=jnp.float32):
    """Deterministic init mimicking nn.Linear default (uniform(-1/sqrt(F), 1/sqrt(F)))."""
    k1, k2, k3, k4 = jax.random.split(key, 4)
    bound = 1.0 / jnp.sqrt(jnp.float32(feature_dim))
    w_pi = jax.random.uniform(k1, (feature_dim, last_layer_dim_pi),
                              minval=-bound, maxval=bound, dtype=dtype)
    b_pi = jax.random.uniform(k2, (last_layer_dim_pi,),
                              minval=-bound, maxval=bound, dtype=dtype)
    w_vf = jax.random.uniform(k3, (feature_dim, last_layer_dim_vf),
                              minval=-bound, maxval=bound, dtype=dtype)
    b_vf = jax.random.uniform(k4, (last_layer_dim_vf,),
                              minval=-bound, maxval=bound, dtype=dtype)
    return w_pi, b_pi, w_vf, b_vf


if __name__ == "__main__":
    key = jax.random.PRNGKey(0)
    k_feat, k_params = jax.random.split(key)

    batch = 20                  # not a multiple of 8 -> exercises the ragged last tile
    feature_dim = 32
    last_layer_dim_pi = 64
    last_layer_dim_vf = 64

    features = jax.random.normal(k_feat, (batch, feature_dim), dtype=jnp.float32)
    w_pi, b_pi, w_vf, b_vf = init_params(k_params, feature_dim,
                                         last_layer_dim_pi, last_layer_dim_vf)

    # Fuse once, outside the hot path (would normally live with the params).
    w_cat, b_cat = fuse_params(w_pi, b_pi, w_vf, b_vf)

    # f32 path: B=20 -> tile=16, 2-tile grid (both v7x TCs), ragged final tile.
    latent_pi, latent_vf = custom_network_forward(
        features, w_cat, b_cat, last_layer_dim_pi, last_layer_dim_vf)
    jax.block_until_ready((latent_pi, latent_vf))

    # Pure-JAX reference check (same math as the PyTorch module's forward).
    ref_pi = jnp.maximum(features @ w_pi + b_pi, 0.0)
    ref_vf = jnp.maximum(features @ w_vf + b_vf, 0.0)
    assert latent_pi.shape == (batch, last_layer_dim_pi)
    assert latent_vf.shape == (batch, last_layer_dim_vf)
    assert jnp.allclose(latent_pi, ref_pi, atol=1e-5, rtol=1e-5)
    assert jnp.allclose(latent_vf, ref_vf, atol=1e-5, rtol=1e-5)

    # bf16 I/O path (halves HBM bytes on v6e/v7x; f32 accumulate inside kernel).
    feats_bf16 = features.astype(jnp.bfloat16)
    w_cat_bf16 = w_cat.astype(jnp.bfloat16)
    out_bf16 = custom_network_forward_fused(feats_bf16, w_cat_bf16, b_cat)
    jax.block_until_ready(out_bf16)
    assert out_bf16.shape == (batch, last_layer_dim_pi + last_layer_dim_vf)
    assert out_bf16.dtype == jnp.bfloat16
    ref_cat = jnp.concatenate([ref_pi, ref_vf], axis=1)
    assert jnp.allclose(out_bf16.astype(jnp.float32), ref_cat, atol=1e-1, rtol=1e-1)

    print("KERNEL_OK")
</pallas_src>

<mosaic_0001>
module attributes {stable_mosaic.version = 11 : i64} {
  func.func @_fused_linear_relu_kernel(%arg0: i32, %arg1: memref<16x32xf32, #tpu.memory_space<vmem>>, %arg2: memref<32x128xf32, #tpu.memory_space<vmem>>, %arg3: memref<1x128xf32, #tpu.memory_space<vmem>>, %arg4: memref<16x128xf32, #tpu.memory_space<vmem>>) attributes {dimension_semantics = [#tpu.dimension_semantics<parallel>], iteration_bounds = array<i64: 2>, scalar_prefetch = 0 : i64, scratch_operands = 0 : i64, tpu.core_type = #tpu.core_type<tc>, window_params = [{transform_indices = @transform_0, window_bounds = array<i64: 16, 32>}, {pipeline_mode = #tpu.pipeline_mode<synchronous>, transform_indices = @transform_1, window_bounds = array<i64: 32, 128>}, {pipeline_mode = #tpu.pipeline_mode<synchronous>, transform_indices = @transform_2, window_bounds = array<i64: 1, 128>}, {transform_indices = @transform_3, window_bounds = array<i64: 16, 128>}]} {
    %c0 = arith.constant 0 : index
    %c0_0 = arith.constant 0 : index
    %0 = vector.load %arg1[%c0, %c0_0] : memref<16x32xf32, #tpu.memory_space<vmem>>, vector<16x32xf32>
    %c0_1 = arith.constant 0 : index
    %c0_2 = arith.constant 0 : index
    %1 = vector.load %arg2[%c0_1, %c0_2] : memref<32x128xf32, #tpu.memory_space<vmem>>, vector<32x128xf32>
    %cst = arith.constant dense<0.000000e+00> : vector<16x128xf32>
    %2 = tpu.matmul %0, %1, %cst {dimension_numbers = #tpu.dot_dimension_numbers<[1], [0], [0], [1], [0, 0, 1, 1], [], []>} : vector<16x32xf32>, vector<32x128xf32>, vector<16x128xf32> -> vector<16x128xf32>
    %c0_3 = arith.constant 0 : index
    %c0_4 = arith.constant 0 : index
    %3 = vector.load %arg3[%c0_3, %c0_4] : memref<1x128xf32, #tpu.memory_space<vmem>>, vector<1x128xf32>
    %4 = vector.broadcast %3 : vector<1x128xf32> to vector<16x128xf32>
    %5 = arith.addf %2, %4 : vector<16x128xf32>
    %cst_5 = arith.constant 0.000000e+00 : f32
    %6 = vector.broadcast %cst_5 : f32 to vector<16x128xf32>
    %7 = arith.maximumf %5, %6 : vector<16x128xf32>
    %c0_6 = arith.constant 0 : index
    %c0_7 = arith.constant 0 : index
    %8 = vector.load %arg4[%c0_6, %c0_7] : memref<16x128xf32, #tpu.memory_space<vmem>>, vector<16x128xf32>
    tpu.vector_store %arg4[%c0_6, %c0_7], %7 {strides = array<i32>} : memref<16x128xf32, #tpu.memory_space<vmem>>, vector<16x128xf32>,
    return
  }
  func.func @transform_0(%arg0: i32) -> (i32, i32) {
    %c0_i32 = arith.constant 0 : i32
    %c0_i32_0 = arith.constant 0 : i32
    return %arg0, %c0_i32 : i32, i32
  }
  func.func @transform_1(%arg0: i32) -> (i32, i32) {
    %c0_i32 = arith.constant 0 : i32
    %c0_i32_0 = arith.constant 0 : i32
    %c0_i32_1 = arith.constant 0 : i32
    return %c0_i32, %c0_i32_0 : i32, i32
  }
  func.func @transform_2(%arg0: i32) -> (i32, i32) {
    %c0_i32 = arith.constant 0 : i32
    %c0_i32_0 = arith.constant 0 : i32
    %c0_i32_1 = arith.constant 0 : i32
    return %c0_i32, %c0_i32_0 : i32, i32
  }
  func.func @transform_3(%arg0: i32) -> (i32, i32) {
    %c0_i32 = arith.constant 0 : i32
    %c0_i32_0 = arith.constant 0 : i32
    return %arg0, %c0_i32 : i32, i32
  }
}

</mosaic_0001>

<llo_original>
// kernel: tpu_custom_call.1
$region0: #{tpu_custom_call.1}
  #allocation0 [shape = 'u32[]', space=smem, size = 0x4, offset = 0x4, fixed_abs, tag = 'smem constant byte address 0x4 - core index']
  #allocation1 [shape = 'u32[144,128]{1,0:T(1,128)}', space=vmem, size = 0x12000, scoped, tag = 'internal scratch']
  %s0 = inlined_call_operand.hbm [shape: f32[20,32], index: 0, kind: input, shape index: {}]
  %s1 = inlined_call_operand.hbm [shape: f32[32,128], index: 1, kind: input, shape index: {}]
  %s2 = inlined_call_operand.vmem [shape: f32[1,128], index: 2, kind: input, shape index: {}]
  %s3 = inlined_call_operand.hbm [shape: f32[20,128], index: 3, kind: output, shape index: {}]
  %s4 = sld [smem:[#allocation0]]
  $region53: #{tpu_custom_call.1} parent=0
    _
  %s6 = ssub.s32 1, %s4
  %s7 = scalar_select 0, %s6, %s4
  $region1: #{tpu_custom_call.1} parent=0
    #allocation2 [shape = 'u8[16384]{0}', space=vmem, size = 0x4000, scoped, tag = 'input window, operand 0']
    #allocation3 [shape = 's32[2]{0}', space=sflag, size = 0x8, scoped, tag = 'scoped memory for tpu_custom_call.1']
    #allocation4 [shape = 's32[2]{0}', space=sflag, size = 0x8, scoped, tag = 'scoped memory for tpu_custom_call.1']
    #allocation5 [shape = 'u8[16384]{0}', space=vmem, size = 0x4000, scoped, tag = 'input window, operand 1, single buffered']
    #allocation6 [shape = 's32[1]{0}', space=sflag, size = 0x4, scoped, tag = 'scoped memory for tpu_custom_call.1']
    #allocation7 [shape = 'u8[16384]{0}', space=vmem, size = 0x4000, scoped, tag = 'output window, operand 0']
    %8 = vsyncpa [#allocation3], 0
    %s9 = scalar_lea.sflag [#allocation3], 1
    %10 = vsyncpa %s9, 0
    %11 = vsyncpa [#allocation6], 0
    %12 = vsyncpa [#allocation4], 0
    %s13 = scalar_lea.sflag [#allocation4], 1
    %14 = vsyncpa %s13, 0
    loop: start=0, step=1, limit=4
    $region2: #{tpu_custom_call.1} parent=1 // loop_pre_header
      _
    $region3: #{tpu_custom_call.1} parent=1 // loop_header
      %s16 = sphi 0, %s20
      %p17 = scmp.ge.s32.totalorder %s16, 4
      %s26 = sphi 0, %s28
      %s29 = sphi 0, %s26
      %s30 = sphi 0, %s29
      %s46 = sphi 0, %s30
      %s50 = sphi 0, %s50
      %s52 = sphi 0, %s50
      %s53 = sphi 0, %s52
      %s67 = sphi 0, %s53
      %s71 = sphi 0, %s71
      %s73 = sphi 0, %s71
      %s74 = sphi 0, %s73
      %s88 = sphi 0, %s74
      %s94 = sphi 0, %s96
      %s97 = sphi 0, %s94
      %s98 = sphi 0, %s97
      %s114 = sphi 0, %s98
    $region4: #{tpu_custom_call.1} parent=1 // loop_header_branch
      %19 = sbr.rel (%p17) target = $region8
    $region5: #{tpu_custom_call.1} parent=1 // loop_body
      %s21 = ssub.s32 %s16, 1
      %s22 = ssub.s32 %s16, 2
      %s23 = sadd.s32 %s16, 1
      %s24 = ssub.s32 %s16, %s23
      %p25 = scmp.eq.s32.totalorder %s24, 0
      %s27 = sadd.s32 %s26, 1
      %s28 = scalar_select %p25, %s26, %s27
      %p31 = pneg %p25
      %p32 = scmp.eq.s32.totalorder %s16, 1
      %p33 = por %p31, %p32
      %p34 = scmp.ne.s32.totalorder %s26, %s29
      %p35 = scmp.eq.s32.totalorder %s16, 0
      %p36 = por %p34, %p35
      %p37 = scmp.ne.s32.totalorder %s26, %s29
      %p38 = scmp.eq.s32.totalorder %s21, 1
      %p39 = por %p37, %p38
      %p40 = scmp.ne.s32.totalorder %s29, %s30
      %p41 = scmp.eq.s32.totalorder %s21, 0
      %p42 = por %p40, %p41
      %p43 = scmp.ne.s32.totalorder %s29, %s30
      %p44 = scmp.eq.s32.totalorder %s22, 1
      %p45 = por %p43, %p44
      %p47 = scmp.ne.s32.totalorder %s30, %s46
      %p48 = scmp.eq.s32.totalorder %s22, 0
      %p49 = por %p47, %p48
      %s51 = sadd.s32 %s50, 1
      %p54 = scmp.eq.s32.totalorder %s16, 1
      %p55 = scmp.ne.s32.totalorder %s50, %s52
      %p56 = scmp.eq.s32.totalorder %s16, 0
      %p57 = por %p55, %p56
      %p58 = scmp.ne.s32.totalorder %s50, %s52
      %p59 = scmp.eq.s32.totalorder %s21, 1
      %p60 = por %p58, %p59
      %p61 = scmp.ne.s32.totalorder %s52, %s53
      %p62 = scmp.eq.s32.totalorder %s21, 0
      %p63 = por %p61, %p62
      %p64 = scmp.ne.s32.totalorder %s52, %s53
      %p65 = scmp.eq.s32.totalorder %s22, 1
      %p66 = por %p64, %p65
      %p68 = scmp.ne.s32.totalorder %s53, %s67
      %p69 = scmp.eq.s32.totalorder %s22, 0
      %p70 = por %p68, %p69
      %s72 = sadd.s32 %s71, 1
      %p75 = scmp.eq.s32.totalorder %s16, 1
      %p76 = scmp.ne.s32.totalorder %s71, %s73
      %p77 = scmp.eq.s32.totalorder %s16, 0
      %p78 = por %p76, %p77
      %p79 = scmp.ne.s32.totalorder %s71, %s73
      %p80 = scmp.eq.s32.totalorder %s21, 1
      %p81 = por %p79, %p80
      %p82 = scmp.ne.s32.totalorder %s73, %s74
      %p83 = scmp.eq.s32.totalorder %s21, 0
      %p84 = por %p82, %p83
      %p85 = scmp.ne.s32.totalorder %s73, %s74
      %p86 = scmp.eq.s32.totalorder %s22, 1
      %p87 = por %p85, %p86
      %p89 = scmp.ne.s32.totalorder %s74, %s88
      %p90 = scmp.eq.s32.totalorder %s22, 0
      %p91 = por %p89, %p90
      %s92 = ssub.s32 %s16, %s23
      %p93 = scmp.eq.s32.totalorder %s92, 0
      %s95 = sadd.s32 %s94, 1
      %s96 = scalar_select %p93, %s94, %s95
      %p99 = pneg %p93
      %p100 = scmp.eq.s32.totalorder %s16, 1
      %p101 = por %p99, %p100
      %p102 = scmp.ne.s32.totalorder %s94, %s97
      %p103 = scmp.eq.s32.totalorder %s16, 0
      %p104 = por %p102, %p103
      %p105 = scmp.ne.s32.totalorder %s94, %s97
      %p106 = scmp.eq.s32.totalorder %s21, 1
      %p107 = por %p105, %p106
      %p108 = scmp.ne.s32.totalorder %s97, %s98
      %p109 = scmp.eq.s32.totalorder %s21, 0
      %p110 = por %p108, %p109
      %p111 = scmp.ne.s32.totalorder %s97, %s98
      %p112 = scmp.eq.s32.totalorder %s22, 1
      %p113 = por %p111, %p112
      %p115 = scmp.ne.s32.totalorder %s98, %s114
      %p116 = scmp.eq.s32.totalorder %s22, 0
      %p117 = por %p115, %p116
      %p118 = scmp.le.s32.totalorder 1, %s16
      %p119 = scmp.lt.s32.totalorder %s16, 3
      %p120 = pnand %p118, %p119
      %p121 = pneg %p120
      // Predicated region
      $region9: #{tpu_custom_call.1} parent=5 // pred_check
        _
      $region10: #{tpu_custom_call.1} parent=5 // pred_check_branch
        %123 = sbr.rel (%p120) target = $region12
      $region11: #{tpu_custom_call.1} parent=5 // pred_region
        %s124 = ssub.s32 %s16, 1
        // Predicated region
        $region13: #{tpu_custom_call.1} parent=11 // pred_check
          %p125 = pneg %p63
        $region14: #{tpu_custom_call.1} parent=11 // pred_check_branch
          %127 = sbr.rel (%p125) target = $region16
        $region15: #{tpu_custom_call.1} parent=11 // pred_region
          %s129 = ssub.s32 512, 512
          %130 = vsyncadd [#allocation6], %s129
          %s131 = sshll.u32 [#allocation5], 4
          %s132 = int_to_ptr.vmem [resolvable:$true] %s131
          %137 = dma.hbm_to_vmem [thread:$0]  %s1, 512, %s132, [#allocation6], 128, 128, 8
        $region16: #{tpu_custom_call.1} parent=11 // pred_fallthru
          _
        // Predicated region
        $region17: #{tpu_custom_call.1} parent=11 // pred_check
          %p138 = pneg %p84
        $region18: #{tpu_custom_call.1} parent=11 // pred_check_branch
          %140 = sbr.rel (%p138) target = $region20
        $region19: #{tpu_custom_call.1} parent=11 // pred_region
          _
        $region20: #{tpu_custom_call.1} parent=11 // pred_fallthru
          _
      $region12: #{tpu_custom_call.1} parent=5 // pred_fallthru
        _
      %p141 = scmp.lt.s32.totalorder %s16, 2
      // Predicated region
      $region21: #{tpu_custom_call.1} parent=5 // pred_check
        %p142 = pneg %p141
      $region22: #{tpu_custom_call.1} parent=5 // pred_check_branch
        %144 = sbr.rel (%p142) target = $region24
      $region23: #{tpu_custom_call.1} parent=5 // pred_region
        // Predicated region
        $region25: #{tpu_custom_call.1} parent=23 // pred_check
          %p145 = pneg %p36
        $region26: #{tpu_custom_call.1} parent=23 // pred_check_branch
          %147 = sbr.rel (%p145) target = $region28
        $region27: #{tpu_custom_call.1} parent=23 // pred_region
          %s148 = sand.u32 %s26, 1
          %s149 = scalar_lea.sflag [#allocation3], %s148
          %s150 = sand.u32 %s26, 1
          %s151 = smul.addr %s150, 16
          %s152 = scalar_lea.vmem [#allocation2], %s151
          %s153 = smul.u32 2, %s16
          %s154 = ssub.s32 3, %s153
          %p155 = scmp.lt.s32.totalorder %s154, 2
          %s156 = scalar_select %p155, %s154, 2
          %s157 = smul.u32 128, %s156
          %s159 = ssub.s32 256, %s157
          %160 = vsyncadd %s149, %s159
          %p161 = scmp.ne.s32.totalorder 0, %s157
          %s162 = smul.addr %s153, 128
          %s163 = scalar_lea.hbm %s0, %s162
          %s164 = smul.u32 8, %s156
          %s165 = sshll.u32 %s152, 4
          %s166 = int_to_ptr.vmem [resolvable:$true] %s165
          %s167 = sshll.u32 %s164, 4
          %171 = dma.hbm_to_vmem [thread:$0]  (%p161), %s163, %s167, %s166, %s149, 128, 128, 8
        $region28: #{tpu_custom_call.1} parent=23 // pred_fallthru
          _
      $region24: #{tpu_custom_call.1} parent=5 // pred_fallthru
        _
      %p172 = scmp.le.s32.totalorder 1, %s16
      %p173 = scmp.lt.s32.totalorder %s16, 3
      %p174 = pnand %p172, %p173
      %p175 = pneg %p174
      // Predicated region
      $region29: #{tpu_custom_call.1} parent=5 // pred_check
        _
      $region30: #{tpu_custom_call.1} parent=5 // pred_check_branch
        %177 = sbr.rel (%p174) target = $region32
      $region31: #{tpu_custom_call.1} parent=5 // pred_region
        %s178 = ssub.s32 %s16, 1
        %s179 = sand.u32 %s29, 1
        %s180 = scalar_lea.sflag [#allocation3], %s179
        %s181 = sand.u32 %s29, 1
        %s182 = smul.addr %s181, 16
        %s183 = scalar_lea.vmem [#allocation2], %s182
        // Predicated region
        $region33: #{tpu_custom_call.1} parent=31 // pred_check
          %p184 = pneg %p42
        $region34: #{tpu_custom_call.1} parent=31 // pred_check_branch
          %186 = sbr.rel (%p184) target = $region36
        $region35: #{tpu_custom_call.1} parent=31 // pred_region
          %187 = dma.done %s180, 256
        $region36: #{tpu_custom_call.1} parent=31 // pred_fallthru
          _
        // Predicated region
        $region37: #{tpu_custom_call.1} parent=31 // pred_check
          %p188 = pneg %p63
        $region38: #{tpu_custom_call.1} parent=31 // pred_check_branch
          %190 = sbr.rel (%p188) target = $region40
        $region39: #{tpu_custom_call.1} parent=31 // pred_region
          %191 = dma.done [#allocation6], 512
        $region40: #{tpu_custom_call.1} parent=31 // pred_fallthru
          _
        %s192 = sand.u32 %s29, 1
        %s193 = scalar_lea.sflag [#allocation3], %s192
        %s194 = sand.u32 %s29, 1
        %s195 = smul.addr %s194, 16
        %s196 = scalar_lea.vmem [#allocation2], %s195
        %p197 = pneg %p42
        %p198 = pneg %p39
        %p199 = pneg %p63
        %p200 = pneg %p60
        %p201 = pneg %p84
        %p202 = pneg %p81
        %p203 = pneg %p110
        %p204 = pneg %p107
        %s205 = sand.u32 %s97, 1
        %s206 = scalar_lea.sflag [#allocation4], %s205
        %s207 = sand.u32 %s97, 1
        %s208 = smul.addr %s207, 16
        %s209 = scalar_lea.vmem [#allocation7], %s208
        %s210 = smul.u32 2, %s21
        %s211 = ssub.s32 3, %s210
        %p212 = scmp.lt.s32.totalorder %s211, 2
        %s213 = scalar_select %p212, %s211, 2
        %s214 = smul.u32 128, %s213
        %s215 = smul.u32 2, %s21
        %s216 = ssub.s32 3, %s215
        %p217 = scmp.lt.s32.totalorder %s216, 2
        %s218 = scalar_select %p217, %s216, 2
        %s219 = smul.u32 128, %s218
        %v220 = vld [vmem:[%s183] sm:$0xff]
        %v221 = vld [vmem:[%s183 + $0x8] sm:$0xff]
        %v222 = vld [vmem:[#allocation5] sm:$0xff]
        %v223 = vld [vmem:[#allocation5 + $0x8] sm:$0xff]
        %v224 = vld [vmem:[#allocation5 + $0x10] sm:$0xff]
        %v225 = vld [vmem:[#allocation5 + $0x18] sm:$0xff]
        %v226 = vld [vmem:[%s2] sm:$0x1]
        %v228 = vlaneseq
        %v229 = vshrl.u32 %v228, 7
        %v230 = vsub.s32 0, %v229
        %v231 = vrot.slane %v226, %v230
        %vm233 = vcmask 261120
        %v235 = vsel %vm233, %v220, 0
        %v238 = vsel %vm233, %v221, 0
        %240 = vmatprep.subr.mxu0 0.0
        %241 = vmatpush1.msra.mxu0 0.0
        %242 = vmatprep.subr.mxu0 0.0
        %243 = vmatpush1.msra.mxu0 0.0
        %244 = vmatprep.subr.mxu0 0.0
        %245 = vmatpush1.msra.mxu0 0.0
        %246 = vmatprep.subr.mxu0 0.0
        %247 = vmatpush1.msra.mxu0 0.0
        %248 = vmatprep.subr.mxu0 0.0
        %249 = vmatpush1.msra.mxu0 0.0
        %250 = vmatprep.subr.mxu0 0.0
        %251 = vmatpush1.msra.mxu0 0.0
        %252 = vmatprep.subr.mxu0 0.0
        %253 = vmatpush1.msra.mxu0 0.0
        %254 = vmatprep.subr.mxu0 0.0
        %255 = vmatpush1.msra.mxu0 0.0
        %256 = vmatprep.subr.mxu0 0.0
        %257 = vmatpush1.msra.mxu0 0.0
        %258 = vmatprep.subr.mxu0 0.0
        %259 = vmatpush1.msra.mxu0 0.0
        %260 = vmatprep.subr.mxu0 0.0
        %261 = vmatpush1.msra.mxu0 0.0
        %262 = vmatprep.subr.mxu0 0.0
        %263 = vmatpush1.msra.mxu0 0.0
        %264 = vmatprep.subr.mxu0 0.0
        %265 = vmatpush1.msra.mxu0 %v225
        %266 = vmatprep.subr.mxu0 0.0
        %267 = vmatpush1.msra.mxu0 %v224
        %268 = vmatprep.subr.mxu0 0.0
        %269 = vmatpush1.msra.mxu0 %v223
        %270 = vmatprep.subr.mxu0 0.0
        %271 = vmatpush1.msra.mxu0 %v222
        %272 = vmatprep.subr.mxu0 0.0
        %273 = vmatpush2.msra.mxu0 0.0
        %274 = vmatprep.subr.mxu0 0.0
        %275 = vmatpush2.msra.mxu0 0.0
        %276 = vmatprep.subr.mxu0 0.0
        %277 = vmatpush2.msra.mxu0 0.0
        %278 = vmatprep.subr.mxu0 0.0
        %279 = vmatpush2.msra.mxu0 0.0
        %280 = vmatprep.subr.mxu0 0.0
        %281 = vmatpush2.msra.mxu0 0.0
        %282 = vmatprep.subr.mxu0 0.0
        %283 = vmatpush2.msra.mxu0 0.0
        %284 = vmatprep.subr.mxu0 0.0
        %285 = vmatpush2.msra.mxu0 0.0
        %286 = vmatprep.subr.mxu0 0.0
        %287 = vmatpush2.msra.mxu0 0.0
        %288 = vmatprep.subr.mxu0 0.0
        %289 = vmatpush2.msra.mxu0 0.0
        %290 = vmatprep.subr.mxu0 0.0
        %291 = vmatpush2.msra.mxu0 0.0
        %292 = vmatprep.subr.mxu0 0.0
        %293 = vmatpush2.msra.mxu0 0.0
        %294 = vmatprep.subr.mxu0 0.0
        %295 = vmatpush2.msra.mxu0 0.0
        %296 = vmatprep.subr.mxu0 0.0
        %297 = vmatpush2.msra.mxu0 0.0
        %298 = vmatprep.subr.mxu0 0.0
        %299 = vmatpush2.msra.mxu0 0.0
        %300 = vmatprep.subr.mxu0 0.0
        %301 = vmatpush2.msra.mxu0 0.0
        %302 = vmatprep.subr.mxu0 0.0
        %303 = vmatpush2.msra.mxu0 0.0
        %304 = vmatprep.mubr.f32.mxu0 0.0
        %305 = vmatmul.mubr.f32.gmra.mxu0 %v235
        %v306 = vpop.f32.mrf.mxu0
        %v307 = vadd.f32 %v231, %v306
        %v308 = vpop.f32.mrf.mxu0
        %309 = vmatprep.mubr.f32.mxu0 0.0
        %310 = vmatmul.mubr.f32.gmra.mxu0 %v238
        %v311 = vpop.f32.mrf.mxu0
        %v312 = vadd.f32 %v231, %v311
        %v313 = vpop.f32.mrf.mxu0
        %314 = vdwg.mxu0
        %v315 = vmax.f32 %v307, 0.0
        %v316 = vmax.f32 %v312, 0.0
        %317 = vst [vmem:[%s209] sm:$0xff] %v315
        %318 = vst [vmem:[%s209 + $0x8] sm:$0xff] %v316
        %s319 = sand.u32 %s97, 1
        %s320 = scalar_lea.sflag [#allocation4], %s319
        %s321 = sand.u32 %s97, 1
        %s322 = smul.addr %s321, 16
        %s323 = scalar_lea.vmem [#allocation7], %s322
        // Predicated region
        $region41: #{tpu_custom_call.1} parent=31 // pred_check
          %p324 = pneg %p107
        $region42: #{tpu_custom_call.1} parent=31 // pred_check_branch
          %326 = sbr.rel (%p324) target = $region44
        $region43: #{tpu_custom_call.1} parent=31 // pred_region
          %s327 = smul.u32 2, %s21
          %s328 = ssub.s32 3, %s327
          %p329 = scmp.lt.s32.totalorder %s328, 2
          %s330 = scalar_select %p329, %s328, 2
          %s331 = smul.u32 128, %s330
          %s333 = ssub.s32 256, %s331
          %334 = vsyncadd %s320, %s333
          %p335 = scmp.ne.s32.totalorder 0, %s331
          %s336 = smul.addr %s327, 128
          %s337 = scalar_lea.hbm %s3, %s336
          %s338 = smul.u32 8, %s330
          %s339 = sshll.u32 %s323, 4
          %s340 = int_to_ptr.vmem [resolvable:$true] %s339
          %s341 = sshll.u32 %s338, 4
          %345 = dma.vmem_to_hbm [thread:$0]  (%p335), %s340, %s341, %s337, %s320, 128, 128, 8
        $region44: #{tpu_custom_call.1} parent=31 // pred_fallthru
          _
      $region32: #{tpu_custom_call.1} parent=5 // pred_fallthru
        _
      %p346 = scmp.le.s32.totalorder 2, %s16
      // Predicated region
      $region45: #{tpu_custom_call.1} parent=5 // pred_check
        %p347 = pneg %p346
      $region46: #{tpu_custom_call.1} parent=5 // pred_check_branch
        %349 = sbr.rel (%p347) target = $region48
      $region47: #{tpu_custom_call.1} parent=5 // pred_region
        %s350 = ssub.s32 %s16, 2
        // Predicated region
        $region49: #{tpu_custom_call.1} parent=47 // pred_check
          %p351 = pneg %p113
        $region50: #{tpu_custom_call.1} parent=47 // pred_check_branch
          %353 = sbr.rel (%p351) target = $region52
        $region51: #{tpu_custom_call.1} parent=47 // pred_region
          %s354 = sand.u32 %s98, 1
          %s355 = scalar_lea.sflag [#allocation4], %s354
          %s356 = sand.u32 %s98, 1
          %s357 = smul.addr %s356, 16
          %s358 = scalar_lea.vmem [#allocation7], %s357
          %359 = dma.done %s355, 256
        $region52: #{tpu_custom_call.1} parent=47 // pred_fallthru
          _
      $region48: #{tpu_custom_call.1} parent=5 // pred_fallthru
        _
    $region6: #{tpu_custom_call.1} parent=1 // loop_footer
      %s20 = sadd.s32 1, %s16
    $region7: #{tpu_custom_call.1} parent=1 // loop_footer_branch
      %15 = sbr.rel target = $region3
    $region8: #{tpu_custom_call.1} parent=1 // loop_exit
      _
    %360 = vsyncpa [#allocation3], 1
    %s361 = scalar_lea.sflag [#allocation3], 1
    %362 = vsyncpa %s361, 1
    %363 = vsyncpa [#allocation6], 1
    %364 = vsyncpa [#allocation4], 1
    %s365 = scalar_lea.sflag [#allocation4], 1
    %366 = vsyncpa %s365, 1

</llo_original>
